<compile_context>
chip_gen: v5e
topology: v5e:2x2
jax: 0.10.0
libtpu: 0.0.40
codegen_flags: <defaults>
</compile_context>

<pallas_src>
import functools
import math

import jax
import jax.numpy as jnp
from jax import lax
from jax.experimental import pallas as pl
from jax.experimental.pallas import tpu as pltpu

# Padded feature width (one full vreg lane dim) and minimum sublane-padded seq.
D_PAD = 128
S_PAD_MIN = 8


def _round_up(n, m):
    return ((n + m - 1) // m) * m


def _fused_attention_kernel(x_ref, w_ref, o_ref, *, seq_valid):
    """One sequence per grid step.

    x_ref: (S_pad, D_PAD)      f32, inputs zero-padded to 128 lanes / 8k sublanes.
    w_ref: (D_PAD, 2*D_PAD)    f32, columns = [ A | Wv^T ], each slot 128 wide;
                               A = (Wq^T @ Wk) / sqrt(d_out); unused entries zero.
    o_ref: (S_pad, D_PAD)      f32, context vectors in columns [:d_out]; rows
                               >= seq_valid are padding.
    """
    x = x_ref[...]                                                     # (S_pad, 128)

    # One fused, lane-dense matmul producing [x@A | x@Wv^T].
    av = jnp.dot(x, w_ref[...], preferred_element_type=jnp.float32)   # (S_pad, 256)
    xa = av[:, :D_PAD]                                                 # (S_pad, 128)
    v = av[:, D_PAD:]                                                  # (S_pad, 128)

    # scores = (x @ A) @ x^T  ==  (q / sqrt(d_out)) @ k^T ; zero padding lanes
    # contribute exactly 0 to the contraction.
    scores = lax.dot_general(
        xa, x,
        dimension_numbers=(((1,), (1,)), ((), ())),
        preferred_element_type=jnp.float32,
    )                                                                  # (S_pad, S_pad)

    # Mask padded key columns so they get zero softmax weight (static branch:
    # compiles away when S_pad == seq_valid).
    s_pad = scores.shape[-1]
    if seq_valid < s_pad:
        col_ids = lax.broadcasted_iota(jnp.int32, (scores.shape[0], s_pad), 1)
        scores = jnp.where(col_ids < seq_valid, scores, jnp.float32(-1e30))

    # Numerically-stable softmax with deferred (exact) normalization.
    m = jnp.max(scores, axis=-1, keepdims=True)                        # (S_pad, 1)
    e = jnp.exp(scores - m)                                            # (S_pad, S_pad)
    denom = jnp.sum(e, axis=-1, keepdims=True)                         # (S_pad, 1)

    ctx = jnp.dot(e, v, preferred_element_type=jnp.float32)            # (S_pad, 128)
    o_ref[...] = (ctx * pl.reciprocal(denom, approx=False)).astype(o_ref.dtype)


def prepare_fused_weight(wq, wk, wv):
    """Init-time packing (outside the hot path) of the three nn.Linear weights
    ((d_out, d_in) layout) into one lane-dense (D_PAD, 2*D_PAD) matrix:
      columns [0:128)   -> A = (Wq^T @ Wk) / sqrt(d_out)   (the scale is folded here)
      columns [128:256) -> Wv^T
    Unused rows/columns are zero, so padded lanes contribute nothing."""
    d_out, d_in = wq.shape
    a = (wq.T.astype(jnp.float32) @ wk.astype(jnp.float32)) / math.sqrt(d_out)
    w = jnp.zeros((D_PAD, 2 * D_PAD), dtype=jnp.float32)
    w = w.at[:d_in, :d_in].set(a)
    w = w.at[:d_in, D_PAD:D_PAD + d_out].set(wv.T.astype(jnp.float32))
    return w


@jax.jit
def linear_pytorch_tokenizer_forward_padded(inputs, w_fused):
    """Hot-path entry point.

    inputs:  (B, S, d_in) f32.
    w_fused: (D_PAD, 2*D_PAD) from prepare_fused_weight.
    Returns the lane/sublane-padded context slab (B, S_pad, D_PAD); valid data
    lives in [:, :S, :d_out].  Slice at the FINAL consumer (keeps layout
    lane-dense in between)."""
    B, S, d_in = inputs.shape
    s_pad = max(S_PAD_MIN, _round_up(S, 8))

    # Zero-pad to full (8, 128) tiles once per call (fused by XLA under jit).
    x_pad = jnp.pad(inputs.astype(jnp.float32),
                    ((0, 0), (0, s_pad - S), (0, D_PAD - d_in)))

    kernel = functools.partial(_fused_attention_kernel, seq_valid=S)
    return pl.pallas_call(
        kernel,
        out_shape=jax.ShapeDtypeStruct((B, s_pad, D_PAD), jnp.float32),
        grid=(B,),
        in_specs=[
            pl.BlockSpec((None, s_pad, D_PAD), lambda b: (b, 0, 0)),
            pl.BlockSpec((D_PAD, 2 * D_PAD), lambda b: (0, 0)),
        ],
        out_specs=pl.BlockSpec((None, s_pad, D_PAD), lambda b: (b, 0, 0)),
        compiler_params=pltpu.CompilerParams(
            dimension_semantics=("parallel",)),
    )(x_pad, w_fused)


@functools.partial(jax.jit, static_argnames=("d_out",))
def linear_pytorch_tokenizer_forward(inputs, w_fused, *, d_out):
    """Drop-in module-equivalent forward: (S, d_in) -> (S, d_out) or
    (B, S, d_in) -> (B, S, d_out)."""
    squeeze = inputs.ndim == 2
    x = inputs[None] if squeeze else inputs
    S = x.shape[1]
    out_padded = linear_pytorch_tokenizer_forward_padded(x, w_fused)
    out = out_padded[:, :S, :d_out]
    return out[0] if squeeze else out


def _reference_forward(inputs, wq, wk, wv, d_out):
    """Pure-JAX reference replicating the PyTorch module's forward (batched)."""
    q = inputs @ wq.T
    k = inputs @ wk.T
    v = inputs @ wv.T
    scores = q @ jnp.swapaxes(k, -1, -2)
    w = jax.nn.softmax(scores / math.sqrt(d_out), axis=-1)
    return w @ v


if __name__ == "__main__":
    dimension_in = 3
    dimension_out = 2
    batch = 8
    seq_len = 6

    # Sequence 0 = the exact deterministic inputs from the PyTorch script.
    base_inputs = jnp.array(
        [[0.43, 0.15, 0.89],
         [0.55, 0.87, 0.66],
         [0.57, 0.85, 0.64],
         [0.22, 0.58, 0.33],
         [0.77, 0.25, 0.10],
         [0.05, 0.80, 0.55]],
        dtype=jnp.float32,
    )

    key = jax.random.PRNGKey(0)
    kq, kk, kv, kx = jax.random.split(key, 4)

    # Remaining batch entries: deterministic random sequences.
    extra = jax.random.uniform(kx, (batch - 1, seq_len, dimension_in),
                               dtype=jnp.float32)
    inputs = jnp.concatenate([base_inputs[None], extra], axis=0)  # (8, 6, 3)

    # Deterministic weights mimicking nn.Linear's default U(-1/sqrt(fan_in), ...)
    # init, stored in nn.Linear's (d_out, d_in) layout.
    bound = 1.0 / math.sqrt(dimension_in)
    wq = jax.random.uniform(kq, (dimension_out, dimension_in),
                            minval=-bound, maxval=bound, dtype=jnp.float32)
    wk = jax.random.uniform(kk, (dimension_out, dimension_in),
                            minval=-bound, maxval=bound, dtype=jnp.float32)
    wv = jax.random.uniform(kv, (dimension_out, dimension_in),
                            minval=-bound, maxval=bound, dtype=jnp.float32)

    # Init-time weight fusion + scale fold (outside the per-call hot path).
    w_fused = prepare_fused_weight(wq, wk, wv)

    # Hot path: one gridded pallas_call over the whole batch, padded output slab.
    out_padded = linear_pytorch_tokenizer_forward_padded(inputs, w_fused)
    out_padded = jax.block_until_ready(out_padded)
    assert out_padded.shape == (batch, 8, D_PAD)

    # Final consumer slices back to the logical shape.
    out = out_padded[:, :seq_len, :dimension_out]
    ref = _reference_forward(inputs, wq, wk, wv, dimension_out)
    assert out.shape == (batch, seq_len, dimension_out)
    max_diff = float(jnp.max(jnp.abs(out - ref)))
    assert jnp.allclose(out, ref, atol=1e-4, rtol=1e-4), (
        f"batched path: max abs diff = {max_diff}")

    # Drop-in single-sequence API (module-equivalent semantics).
    out_single = linear_pytorch_tokenizer_forward(base_inputs, w_fused,
                                                  d_out=dimension_out)
    out_single = jax.block_until_ready(out_single)
    ref_single = _reference_forward(base_inputs, wq, wk, wv, dimension_out)
    assert out_single.shape == (seq_len, dimension_out)
    assert jnp.allclose(out_single, ref_single, atol=1e-4, rtol=1e-4), (
        f"single path: max abs diff = "
        f"{float(jnp.max(jnp.abs(out_single - ref_single)))}")

    print("KERNEL_OK")
</pallas_src>

<mosaic_0001>
module attributes {stable_mosaic.version = 11 : i64} {
  func.func @_fused_attention_kernel(%arg0: i32, %arg1: memref<1x8x128xf32, #tpu.memory_space<vmem>>, %arg2: memref<128x256xf32, #tpu.memory_space<vmem>>, %arg3: memref<1x8x128xf32, #tpu.memory_space<vmem>>) attributes {dimension_semantics = [#tpu.dimension_semantics<parallel>], iteration_bounds = array<i64: 8>, scalar_prefetch = 0 : i64, scratch_operands = 0 : i64, tpu.core_type = #tpu.core_type<tc>, window_params = [{transform_indices = @transform_0, window_bounds = array<i64: 1, 8, 128>}, {pipeline_mode = #tpu.pipeline_mode<synchronous>, transform_indices = @transform_1, window_bounds = array<i64: 128, 256>}, {transform_indices = @transform_2, window_bounds = array<i64: 1, 8, 128>}]} {
    %c0 = arith.constant 0 : index
    %c0_0 = arith.constant 0 : index
    %c0_1 = arith.constant 0 : index
    %0 = vector.load %arg1[%c0, %c0_0, %c0_1] : memref<1x8x128xf32, #tpu.memory_space<vmem>>, vector<1x8x128xf32>
    %1 = vector.shape_cast %0 : vector<1x8x128xf32> to vector<8x128xf32>
    %c0_2 = arith.constant 0 : index
    %c0_3 = arith.constant 0 : index
    %2 = vector.load %arg2[%c0_2, %c0_3] : memref<128x256xf32, #tpu.memory_space<vmem>>, vector<128x256xf32>
    %cst = arith.constant dense<0.000000e+00> : vector<8x256xf32>
    %3 = tpu.matmul %1, %2, %cst {dimension_numbers = #tpu.dot_dimension_numbers<[1], [0], [0], [1], [0, 0, 1, 1], [], []>} : vector<8x128xf32>, vector<128x256xf32>, vector<8x256xf32> -> vector<8x256xf32>
    %4 = vector.extract_strided_slice %3 {offsets = [0, 0], sizes = [8, 128], strides = [1, 1]} : vector<8x256xf32> to vector<8x128xf32>
    %5 = vector.extract_strided_slice %3 {offsets = [0, 128], sizes = [8, 128], strides = [1, 1]} : vector<8x256xf32> to vector<8x128xf32>
    %cst_4 = arith.constant dense<0.000000e+00> : vector<8x8xf32>
    %6 = tpu.matmul %4, %1, %cst_4 {dimension_numbers = #tpu.dot_dimension_numbers<[1], [1], [0], [0], [0, 0, 1, 0], [], []>} : vector<8x128xf32>, vector<8x128xf32>, vector<8x8xf32> -> vector<8x8xf32>
    %7 = tpu.iota {dimensions = array<i32: 1>} : vector<8x8xi32>
    %c6_i32 = arith.constant 6 : i32
    %8 = vector.broadcast %c6_i32 : i32 to vector<8x8xi32>
    %9 = arith.cmpi slt, %7, %8 : vector<8x8xi32>
    %cst_5 = arith.constant -1.000000e+30 : f32
    %10 = vector.broadcast %cst_5 : f32 to vector<8x8xf32>
    %11 = arith.select %9, %6, %10 : vector<8x8xi1>, vector<8x8xf32>
    %cst_6 = arith.constant dense<0xFF800000> : vector<8xf32>
    %12 = vector.multi_reduction <maximumf>, %11, %cst_6 [1] : vector<8x8xf32> to vector<8xf32>
    %13 = vector.shape_cast %12 : vector<8xf32> to vector<8x1xf32>
    %14 = vector.broadcast %13 : vector<8x1xf32> to vector<8x8xf32>
    %15 = arith.subf %11, %14 : vector<8x8xf32>
    %16 = math.exp %15 : vector<8x8xf32>
    %cst_7 = arith.constant dense<0.000000e+00> : vector<8xf32>
    %17 = vector.multi_reduction <add>, %16, %cst_7 [1] : vector<8x8xf32> to vector<8xf32>
    %18 = vector.shape_cast %17 : vector<8xf32> to vector<8x1xf32>
    %cst_8 = arith.constant dense<0.000000e+00> : vector<8x128xf32>
    %19 = tpu.matmul %16, %5, %cst_8 {dimension_numbers = #tpu.dot_dimension_numbers<[1], [0], [0], [1], [0, 0, 1, 1], [], []>} : vector<8x8xf32>, vector<8x128xf32>, vector<8x128xf32> -> vector<8x128xf32>
    %20 = tpu.reciprocal %18 : vector<8x1xf32> -> vector<8x1xf32>
    %21 = vector.broadcast %20 : vector<8x1xf32> to vector<8x128xf32>
    %22 = arith.mulf %19, %21 : vector<8x128xf32>
    %c0_9 = arith.constant 0 : index
    %c0_10 = arith.constant 0 : index
    %c0_11 = arith.constant 0 : index
    %23 = vector.load %arg3[%c0_9, %c0_10, %c0_11] : memref<1x8x128xf32, #tpu.memory_space<vmem>>, vector<1x8x128xf32>
    %24 = vector.shape_cast %23 : vector<1x8x128xf32> to vector<8x128xf32>
    %25 = vector.shape_cast %22 : vector<8x128xf32> to vector<1x8x128xf32>
    tpu.vector_store %arg3[%c0_9, %c0_10, %c0_11], %25 {strides = array<i32>} : memref<1x8x128xf32, #tpu.memory_space<vmem>>, vector<1x8x128xf32>,
    return
  }
  func.func @transform_0(%arg0: i32) -> (i32, i32, i32) {
    %c0_i32 = arith.constant 0 : i32
    %c0_i32_0 = arith.constant 0 : i32
    %c0_i32_1 = arith.constant 0 : i32
    return %arg0, %c0_i32, %c0_i32_0 : i32, i32, i32
  }
  func.func @transform_1(%arg0: i32) -> (i32, i32) {
    %c0_i32 = arith.constant 0 : i32
    %c0_i32_0 = arith.constant 0 : i32
    %c0_i32_1 = arith.constant 0 : i32
    return %c0_i32, %c0_i32_0 : i32, i32
  }
  func.func @transform_2(%arg0: i32) -> (i32, i32, i32) {
    %c0_i32 = arith.constant 0 : i32
    %c0_i32_0 = arith.constant 0 : i32
    %c0_i32_1 = arith.constant 0 : i32
    return %arg0, %c0_i32, %c0_i32_0 : i32, i32, i32
  }
}

</mosaic_0001>

<llo_original>
// kernel: linear_pytorch_tokenizer_forward_padded.1
$region0: #{linear_pytorch_tokenizer_forward_padded.1}
  #allocation0 [shape = 'u32[]', space=smem, size = 0x4, offset = 0x4, fixed_abs, tag = 'smem constant byte address 0x4 - core index']
  #allocation1 [shape = 'u32[72,128]{1,0:T(1,128)}', space=vmem, size = 0x9000, scoped, tag = 'internal scratch']
  %s0 = inlined_call_operand.vmem [shape: f32[8,8,128], index: 0, kind: input, shape index: {}]
  %s1 = inlined_call_operand.hbm [shape: f32[128,256], index: 1, kind: input, shape index: {}]
  %s2 = inlined_call_operand.hbm [shape: f32[8,8,128], index: 2, kind: output, shape index: {}]
  %s3 = sld [smem:[#allocation0]]
  $region45: #{linear_pytorch_tokenizer_forward_padded.1} parent=0
    _
  %s5 = ssub.s32 1, %s3
  %s6 = scalar_select 0, %s5, %s3
  $region1: #{linear_pytorch_tokenizer_forward_padded.1} parent=0
    #allocation2 [shape = 'u8[131072]{0}', space=vmem, size = 0x20000, scoped, tag = 'input window, operand 1, single buffered']
    #allocation3 [shape = 's32[2]{0}', space=sflag, size = 0x8, scoped, tag = 'scoped memory for linear_pytorch_tokenizer_forward_padded.1']
    #allocation4 [shape = 's32[2]{0}', space=sflag, size = 0x8, scoped, tag = 'scoped memory for linear_pytorch_tokenizer_forward_padded.1']
    #allocation5 [shape = 'u8[8192]{0}', space=vmem, size = 0x2000, scoped, tag = 'output window, operand 0']
    %7 = vsyncpa [#allocation3], 0
    %8 = vsyncpa [#allocation4], 0
    %s9 = scalar_lea.sflag [#allocation4], 1
    %10 = vsyncpa %s9, 0
    loop: start=0, step=1, limit=10
    $region2: #{linear_pytorch_tokenizer_forward_padded.1} parent=1 // loop_pre_header
      _
    $region3: #{linear_pytorch_tokenizer_forward_padded.1} parent=1 // loop_header
      %s12 = sphi 0, %s16
      %p13 = scmp.ge.s32.totalorder %s12, 10
      %s22 = sphi 0, %s24
      %s25 = sphi 0, %s22
      %s26 = sphi 0, %s25
      %s42 = sphi 0, %s26
      %s46 = sphi 0, %s46
      %s48 = sphi 0, %s46
      %s49 = sphi 0, %s48
      %s63 = sphi 0, %s49
      %s69 = sphi 0, %s71
      %s72 = sphi 0, %s69
      %s73 = sphi 0, %s72
      %s89 = sphi 0, %s73
    $region4: #{linear_pytorch_tokenizer_forward_padded.1} parent=1 // loop_header_branch
      %15 = sbr.rel (%p13) target = $region8
    $region5: #{linear_pytorch_tokenizer_forward_padded.1} parent=1 // loop_body
      %s17 = ssub.s32 %s12, 1
      %s18 = ssub.s32 %s12, 2
      %s19 = sadd.s32 %s12, 1
      %s20 = ssub.s32 %s12, %s19
      %p21 = scmp.eq.s32.totalorder %s20, 0
      %s23 = sadd.s32 %s22, 1
      %s24 = scalar_select %p21, %s22, %s23
      %p27 = pneg %p21
      %p28 = scmp.eq.s32.totalorder %s12, 7
      %p29 = por %p27, %p28
      %p30 = scmp.ne.s32.totalorder %s22, %s25
      %p31 = scmp.eq.s32.totalorder %s12, 0
      %p32 = por %p30, %p31
      %p33 = scmp.ne.s32.totalorder %s22, %s25
      %p34 = scmp.eq.s32.totalorder %s17, 7
      %p35 = por %p33, %p34
      %p36 = scmp.ne.s32.totalorder %s25, %s26
      %p37 = scmp.eq.s32.totalorder %s17, 0
      %p38 = por %p36, %p37
      %p39 = scmp.ne.s32.totalorder %s25, %s26
      %p40 = scmp.eq.s32.totalorder %s18, 7
      %p41 = por %p39, %p40
      %p43 = scmp.ne.s32.totalorder %s26, %s42
      %p44 = scmp.eq.s32.totalorder %s18, 0
      %p45 = por %p43, %p44
      %s47 = sadd.s32 %s46, 1
      %p50 = scmp.eq.s32.totalorder %s12, 7
      %p51 = scmp.ne.s32.totalorder %s46, %s48
      %p52 = scmp.eq.s32.totalorder %s12, 0
      %p53 = por %p51, %p52
      %p54 = scmp.ne.s32.totalorder %s46, %s48
      %p55 = scmp.eq.s32.totalorder %s17, 7
      %p56 = por %p54, %p55
      %p57 = scmp.ne.s32.totalorder %s48, %s49
      %p58 = scmp.eq.s32.totalorder %s17, 0
      %p59 = por %p57, %p58
      %p60 = scmp.ne.s32.totalorder %s48, %s49
      %p61 = scmp.eq.s32.totalorder %s18, 7
      %p62 = por %p60, %p61
      %p64 = scmp.ne.s32.totalorder %s49, %s63
      %p65 = scmp.eq.s32.totalorder %s18, 0
      %p66 = por %p64, %p65
      %s67 = ssub.s32 %s12, %s19
      %p68 = scmp.eq.s32.totalorder %s67, 0
      %s70 = sadd.s32 %s69, 1
      %s71 = scalar_select %p68, %s69, %s70
      %p74 = pneg %p68
      %p75 = scmp.eq.s32.totalorder %s12, 7
      %p76 = por %p74, %p75
      %p77 = scmp.ne.s32.totalorder %s69, %s72
      %p78 = scmp.eq.s32.totalorder %s12, 0
      %p79 = por %p77, %p78
      %p80 = scmp.ne.s32.totalorder %s69, %s72
      %p81 = scmp.eq.s32.totalorder %s17, 7
      %p82 = por %p80, %p81
      %p83 = scmp.ne.s32.totalorder %s72, %s73
      %p84 = scmp.eq.s32.totalorder %s17, 0
      %p85 = por %p83, %p84
      %p86 = scmp.ne.s32.totalorder %s72, %s73
      %p87 = scmp.eq.s32.totalorder %s18, 7
      %p88 = por %p86, %p87
      %p90 = scmp.ne.s32.totalorder %s73, %s89
      %p91 = scmp.eq.s32.totalorder %s18, 0
      %p92 = por %p90, %p91
      %p93 = scmp.le.s32.totalorder 1, %s12
      %p94 = scmp.lt.s32.totalorder %s12, 9
      %p95 = pnand %p93, %p94
      %p96 = pneg %p95
      // Predicated region
      $region9: #{linear_pytorch_tokenizer_forward_padded.1} parent=5 // pred_check
        _
      $region10: #{linear_pytorch_tokenizer_forward_padded.1} parent=5 // pred_check_branch
        %98 = sbr.rel (%p95) target = $region12
      $region11: #{linear_pytorch_tokenizer_forward_padded.1} parent=5 // pred_region
        %s99 = ssub.s32 %s12, 1
        // Predicated region
        $region13: #{linear_pytorch_tokenizer_forward_padded.1} parent=11 // pred_check
          %p100 = pneg %p59
        $region14: #{linear_pytorch_tokenizer_forward_padded.1} parent=11 // pred_check_branch
          %102 = sbr.rel (%p100) target = $region16
        $region15: #{linear_pytorch_tokenizer_forward_padded.1} parent=11 // pred_region
          %104 = vsyncadd [#allocation3], 0
          %s105 = sshll.u32 %s1, 4
          %s106 = int_to_ptr.hbm [resolvable:$true] %s105
          %s107 = sshll.u32 [#allocation2], 4
          %s108 = int_to_ptr.vmem [resolvable:$true] %s107
          %113 = dma.hbm_to_vmem [thread:$0]  %s106, 4096, %s108, [#allocation3], 256, 256, 16
        $region16: #{linear_pytorch_tokenizer_forward_padded.1} parent=11 // pred_fallthru
          _
      $region12: #{linear_pytorch_tokenizer_forward_padded.1} parent=5 // pred_fallthru
        _
      %p114 = scmp.lt.s32.totalorder %s12, 8
      // Predicated region
      $region17: #{linear_pytorch_tokenizer_forward_padded.1} parent=5 // pred_check
        %p115 = pneg %p114
      $region18: #{linear_pytorch_tokenizer_forward_padded.1} parent=5 // pred_check_branch
        %117 = sbr.rel (%p115) target = $region20
      $region19: #{linear_pytorch_tokenizer_forward_padded.1} parent=5 // pred_region
        // Predicated region
        $region21: #{linear_pytorch_tokenizer_forward_padded.1} parent=19 // pred_check
          %p118 = pneg %p32
        $region22: #{linear_pytorch_tokenizer_forward_padded.1} parent=19 // pred_check_branch
          %120 = sbr.rel (%p118) target = $region24
        $region23: #{linear_pytorch_tokenizer_forward_padded.1} parent=19 // pred_region
          %p121 = scmp.lt.s32.totalorder %s12, 7
          %s122 = scalar_select %p121, %s12, 7
          %s123 = smul.addr %s122, 8
          %s124 = scalar_lea.vmem %s0, %s123
        $region24: #{linear_pytorch_tokenizer_forward_padded.1} parent=19 // pred_fallthru
          _
      $region20: #{linear_pytorch_tokenizer_forward_padded.1} parent=5 // pred_fallthru
        _
      %p125 = scmp.le.s32.totalorder 1, %s12
      %p126 = scmp.lt.s32.totalorder %s12, 9
      %p127 = pnand %p125, %p126
      %p128 = pneg %p127
      // Predicated region
      $region25: #{linear_pytorch_tokenizer_forward_padded.1} parent=5 // pred_check
        _
      $region26: #{linear_pytorch_tokenizer_forward_padded.1} parent=5 // pred_check_branch
        %130 = sbr.rel (%p127) target = $region28
      $region27: #{linear_pytorch_tokenizer_forward_padded.1} parent=5 // pred_region
        %s131 = ssub.s32 %s12, 1
        // Predicated region
        $region29: #{linear_pytorch_tokenizer_forward_padded.1} parent=27 // pred_check
          %p132 = pneg %p59
        $region30: #{linear_pytorch_tokenizer_forward_padded.1} parent=27 // pred_check_branch
          %134 = sbr.rel (%p132) target = $region32
        $region31: #{linear_pytorch_tokenizer_forward_padded.1} parent=27 // pred_region
          %136 = dma.done [#allocation3], 4096
        $region32: #{linear_pytorch_tokenizer_forward_padded.1} parent=27 // pred_fallthru
          _
        %p137 = scmp.lt.s32.totalorder %s17, 7
        %s138 = scalar_select %p137, %s17, 7
        %s139 = smul.addr %s138, 8
        %s140 = scalar_lea.vmem %s0, %s139
        %p141 = pneg %p38
        %p142 = pneg %p35
        %p143 = pneg %p59
        %p144 = pneg %p56
        %p145 = pneg %p85
        %p146 = pneg %p82
        %s147 = sand.u32 %s72, 1
        %s148 = scalar_lea.sflag [#allocation4], %s147
        %s149 = sand.u32 %s72, 1
        %s150 = smul.addr %s149, 8
        %s151 = scalar_lea.vmem [#allocation5], %s150
        %p152 = scmp.lt.s32.totalorder %s17, 7
        %s153 = scalar_select %p152, %s17, 7
        %s154 = smul.addr %s153, 8
        %s155 = scalar_lea.vmem %s0, %s154
        %v156 = vld [vmem:[%s155] sm:$0xff]
        %v157 = vld [vmem:[#allocation2] sm:$0xff]
        %v158 = vld [vmem:[#allocation2 + $0x8] sm:$0xff]
        %v159 = vld [vmem:[#allocation2 + $0x10] sm:$0xff]
        %v160 = vld [vmem:[#allocation2 + $0x18] sm:$0xff]
        %v161 = vld [vmem:[#allocation2 + $0x20] sm:$0xff]
        %v162 = vld [vmem:[#allocation2 + $0x28] sm:$0xff]
        %v163 = vld [vmem:[#allocation2 + $0x30] sm:$0xff]
        %v164 = vld [vmem:[#allocation2 + $0x38] sm:$0xff]
        %v165 = vld [vmem:[#allocation2 + $0x40] sm:$0xff]
        %v166 = vld [vmem:[#allocation2 + $0x48] sm:$0xff]
        %v167 = vld [vmem:[#allocation2 + $0x50] sm:$0xff]
        %v168 = vld [vmem:[#allocation2 + $0x58] sm:$0xff]
        %v169 = vld [vmem:[#allocation2 + $0x60] sm:$0xff]
        %v170 = vld [vmem:[#allocation2 + $0x68] sm:$0xff]
        %v171 = vld [vmem:[#allocation2 + $0x70] sm:$0xff]
        %v172 = vld [vmem:[#allocation2 + $0x78] sm:$0xff]
        %v173 = vld [vmem:[#allocation2 + $0x80] sm:$0xff]
        %v174 = vld [vmem:[#allocation2 + $0x88] sm:$0xff]
        %v175 = vld [vmem:[#allocation2 + $0x90] sm:$0xff]
        %v176 = vld [vmem:[#allocation2 + $0x98] sm:$0xff]
        %v177 = vld [vmem:[#allocation2 + $0xa0] sm:$0xff]
        %v178 = vld [vmem:[#allocation2 + $0xa8] sm:$0xff]
        %v179 = vld [vmem:[#allocation2 + $0xb0] sm:$0xff]
        %v180 = vld [vmem:[#allocation2 + $0xb8] sm:$0xff]
        %v181 = vld [vmem:[#allocation2 + $0xc0] sm:$0xff]
        %v182 = vld [vmem:[#allocation2 + $0xc8] sm:$0xff]
        %v183 = vld [vmem:[#allocation2 + $0xd0] sm:$0xff]
        %v184 = vld [vmem:[#allocation2 + $0xd8] sm:$0xff]
        %v185 = vld [vmem:[#allocation2 + $0xe0] sm:$0xff]
        %v186 = vld [vmem:[#allocation2 + $0xe8] sm:$0xff]
        %v187 = vld [vmem:[#allocation2 + $0xf0] sm:$0xff]
        %v188 = vld [vmem:[#allocation2 + $0xf8] sm:$0xff]
        %189 = vmatpush.msra.mxu0 %v187
        %190 = vmatpush.msra.mxu0 %v185
        %191 = vmatpush.msra.mxu0 %v183
        %192 = vmatpush.msra.mxu0 %v181
        %193 = vmatpush.msra.mxu0 %v179
        %194 = vmatpush.msra.mxu0 %v177
        %195 = vmatpush.msra.mxu0 %v175
        %196 = vmatpush.msra.mxu0 %v173
        %197 = vmatpush.msra.mxu0 %v171
        %198 = vmatpush.msra.mxu0 %v169
        %199 = vmatpush.msra.mxu0 %v167
        %200 = vmatpush.msra.mxu0 %v165
        %201 = vmatpush.msra.mxu0 %v163
        %202 = vmatpush.msra.mxu0 %v161
        %203 = vmatpush.msra.mxu0 %v159
        %204 = vmatpush.msra.mxu0 %v157
        %205 = vmatmul.f32.gmra.mxu0 %v156
        %v206 = vpop.f32.mrf.mxu0
        %v207 = vadd.f32 0.0, %v206
        %208 = vdwg.mxu0
        %209 = vmatpush.msra.mxu0 %v188
        %210 = vmatpush.msra.mxu0 %v186
        %211 = vmatpush.msra.mxu0 %v184
        %212 = vmatpush.msra.mxu0 %v182
        %213 = vmatpush.msra.mxu0 %v180
        %214 = vmatpush.msra.mxu0 %v178
        %215 = vmatpush.msra.mxu0 %v176
        %216 = vmatpush.msra.mxu0 %v174
        %217 = vmatpush.msra.mxu0 %v172
        %218 = vmatpush.msra.mxu0 %v170
        %219 = vmatpush.msra.mxu0 %v168
        %220 = vmatpush.msra.mxu0 %v166
        %221 = vmatpush.msra.mxu0 %v164
        %222 = vmatpush.msra.mxu0 %v162
        %223 = vmatpush.msra.mxu0 %v160
        %224 = vmatpush.msra.mxu0 %v158
        %225 = vmatmul.f32.gmra.mxu0 %v156
        %v226 = vpop.f32.mrf.mxu0
        %v227 = vadd.f32 0.0, %v226
        %228 = vdwg.mxu0
        %229 = vmatpush.xpose.msra.mxu0 0.0
        %230 = vmatpush.xpose.msra.mxu0 0.0
        %231 = vmatpush.xpose.msra.mxu0 0.0
        %232 = vmatpush.xpose.msra.mxu0 0.0
        %233 = vmatpush.xpose.msra.mxu0 0.0
        %234 = vmatpush.xpose.msra.mxu0 0.0
        %235 = vmatpush.xpose.msra.mxu0 0.0
        %236 = vmatpush.xpose.msra.mxu0 0.0
        %237 = vmatpush.xpose.msra.mxu0 0.0
        %238 = vmatpush.xpose.msra.mxu0 0.0
        %239 = vmatpush.xpose.msra.mxu0 0.0
        %240 = vmatpush.xpose.msra.mxu0 0.0
        %241 = vmatpush.xpose.msra.mxu0 0.0
        %242 = vmatpush.xpose.msra.mxu0 0.0
        %243 = vmatpush.xpose.msra.mxu0 0.0
        %244 = vmatpush.xpose.msra.mxu0 %v156
        %245 = vmatmul.f32.gmra.mxu0 %v207
        %v246 = vpop.f32.mrf.mxu0
        %v247 = vadd.f32 0.0, %v246
        %248 = vdwg.mxu0
        %v249 = vlaneseq
        %v250 = vand.u32 %v249, 127
        %vm251 = vcmp.lt.s32.totalorder %v250, 6
        %v252 = vsel %vm251, %v247, -1e+30
        %vm253 = vcmask 64512
        %v254 = vsel %vm253, %v252, -inf
        %255 = vmax.xlane.f32.xlu0 %v254
        %v256 = vpop.xlane.xlu0 %255
        %v257 = vsub.f32 %v252, %v256
        %v258 = vmul.f32 %v257, 1.442695
        %v259 = vpow.pop %v258
        %v260 = vsel %vm253, %v259, 0.0
        %261 = vadd.xlane.f32.xlu0 %v260
        %v262 = vpop.xlane.xlu0 %261
        %v264 = vsel %vm253, %v259, 0
        %266 = vmatpush.msra.mxu0 0.0
        %267 = vmatpush.msra.mxu0 0.0
        %268 = vmatpush.msra.mxu0 0.0
        %269 = vmatpush.msra.mxu0 0.0
        %270 = vmatpush.msra.mxu0 0.0
        %271 = vmatpush.msra.mxu0 0.0
        %272 = vmatpush.msra.mxu0 0.0
        %273 = vmatpush.msra.mxu0 0.0
        %274 = vmatpush.msra.mxu0 0.0
        %275 = vmatpush.msra.mxu0 0.0
        %276 = vmatpush.msra.mxu0 0.0
        %277 = vmatpush.msra.mxu0 0.0
        %278 = vmatpush.msra.mxu0 0.0
        %279 = vmatpush.msra.mxu0 0.0
        %280 = vmatpush.msra.mxu0 0.0
        %281 = vmatpush.msra.mxu0 %v227
        %282 = vmatmul.f32.gmra.mxu0 %v264
        %v283 = vpop.f32.mrf.mxu0
        %v284 = vadd.f32 0.0, %v283
        %285 = vdwg.mxu0
        %v286 = vrcp.pop %v262
        %v287 = vmul.f32 %v262, %v286
        %v288 = vsub.f32 1.0, %v287
        %v289 = vmul.f32 %v286, %v288
        %v290 = vadd.f32 %v286, %v289
        %vm291 = vweird.f32 %v262
        %vm292 = vweird.f32 %v286
        %vm293 = vmor %vm291, %vm292
        %v294 = vsel %vm293, %v286, %v290
        %v295 = vand.u32 2147483647, %v262
        %vm296 = vcmp.eq.f32.partialorder %v295, 8.507059e+37
        %v297 = vand.u32 %v262, 2147483648
        %v298 = vor.u32 1.1754944e-38, %v297
        %v299 = vsel %vm296, %v298, %v294
        %v300 = vmul.f32 %v284, %v299
        %301 = vst [vmem:[%s151] sm:$0xff] %v300
        %s302 = sand.u32 %s72, 1
        %s303 = scalar_lea.sflag [#allocation4], %s302
        %s304 = sand.u32 %s72, 1
        %s305 = smul.addr %s304, 8
        %s306 = scalar_lea.vmem [#allocation5], %s305
        // Predicated region
        $region33: #{linear_pytorch_tokenizer_forward_padded.1} parent=27 // pred_check
          %p307 = pneg %p82
        $region34: #{linear_pytorch_tokenizer_forward_padded.1} parent=27 // pred_check_branch
          %309 = sbr.rel (%p307) target = $region36
        $region35: #{linear_pytorch_tokenizer_forward_padded.1} parent=27 // pred_region
          %311 = vsyncadd %s303, 0
          %s312 = smul.addr %s17, 8
          %s313 = scalar_lea.hbm %s2, %s312
          %s315 = sshll.u32 %s306, 4
          %s316 = int_to_ptr.vmem [resolvable:$true] %s315
          %s317 = sshll.u32 %s313, 4
          %s318 = int_to_ptr.hbm [resolvable:$true] %s317
          %320 = dma.vmem_to_hbm [thread:$0]  %s316, 128, %s318, %s303
        $region36: #{linear_pytorch_tokenizer_forward_padded.1} parent=27 // pred_fallthru
          _
      $region28: #{linear_pytorch_tokenizer_forward_padded.1} parent=5 // pred_fallthru
        _
      %p321 = scmp.le.s32.totalorder 2, %s12
      // Predicated region
      $region37: #{linear_pytorch_tokenizer_forward_padded.1} parent=5 // pred_check
        %p322 = pneg %p321
      $region38: #{linear_pytorch_tokenizer_forward_padded.1} parent=5 // pred_check_branch
        %324 = sbr.rel (%p322) target = $region40
      $region39: #{linear_pytorch_tokenizer_forward_padded.1} parent=5 // pred_region
        %s325 = ssub.s32 %s12, 2
        // Predicated region
        $region41: #{linear_pytorch_tokenizer_forward_padded.1} parent=39 // pred_check
          %p326 = pneg %p88
        $region42: #{linear_pytorch_tokenizer_forward_padded.1} parent=39 // pred_check_branch
          %328 = sbr.rel (%p326) target = $region44
        $region43: #{linear_pytorch_tokenizer_forward_padded.1} parent=39 // pred_region
          %s329 = sand.u32 %s73, 1
          %s330 = scalar_lea.sflag [#allocation4], %s329
          %s331 = sand.u32 %s73, 1
          %s332 = smul.addr %s331, 8
          %s333 = scalar_lea.vmem [#allocation5], %s332
          %335 = dma.done %s330, 128
        $region44: #{linear_pytorch_tokenizer_forward_padded.1} parent=39 // pred_fallthru
          _
      $region40: #{linear_pytorch_tokenizer_forward_padded.1} parent=5 // pred_fallthru
        _
    $region6: #{linear_pytorch_tokenizer_forward_padded.1} parent=1 // loop_footer
      %s16 = sadd.s32 1, %s12
    $region7: #{linear_pytorch_tokenizer_forward_padded.1} parent=1 // loop_footer_branch
      %11 = sbr.rel target = $region3
    $region8: #{linear_pytorch_tokenizer_forward_padded.1} parent=1 // loop_exit
      _
    %336 = vsyncpa [#allocation3], 1
    %s337 = scalar_lea.sflag [#allocation3], 1
    %338 = vsyncpa %s337, 1
    %339 = vsyncpa [#allocation4], 1
    %s340 = scalar_lea.sflag [#allocation4], 1
    %341 = vsyncpa %s340, 1

</llo_original>
